<compile_context>
chip_gen: v7x
topology: tpu7x:2x2x1
jax: 0.10.0
libtpu: 0.0.40
codegen_flags: <defaults>
</compile_context>

<pallas_src>
import functools
import math

import jax
import jax.numpy as jnp
from jax.experimental import pallas as pl
from jax.experimental.pallas import tpu as pltpu

EPS = 1e-12                       # HF ViT layer_norm_eps default
_VMEM_LIMIT = 48 * 1024 * 1024    # explicit scoped-VMEM limit (fits v7x's 64 MiB)


# ----------------------------- helpers ------------------------------------- #

def _bf16(x):
    return x.astype(jnp.bfloat16)


def _layernorm(x, gamma, beta, eps):
    mu = jnp.mean(x, axis=-1, keepdims=True)
    var = jnp.mean((x - mu) ** 2, axis=-1, keepdims=True)
    return (x - mu) * jax.lax.rsqrt(var + eps) * gamma + beta


# ----------------------------- kernels ------------------------------------- #

def matmul_bias_kernel(x_ref, w_ref, b_ref, o_ref):
    # (tile_m, K) @ (K, N) + (N,)  -- patch-embedding "conv"; bf16 MXU, f32 acc.
    o_ref[...] = (
        jnp.dot(_bf16(x_ref[...]), w_ref[...],
                preferred_element_type=jnp.float32)
        + b_ref[0]
    )


def encoder_layer_kernel(h_ref,
                         ln1_g, ln1_b, wqkv, bqkv, wo, bo,
                         ln2_g, ln2_b, w1, b1, w2, b2,
                         o_ref, ctx_ref, *, num_heads, eps):
    """Pre-LN ViT encoder layer for a (block_b, T, H) batch block."""
    block_b, T, H = h_ref.shape
    head_dim = H // num_heads
    scale = 1.0 / math.sqrt(head_dim)

    # Weights are DMA'd once per grid step and reused for every image in the
    # block; the per-image loop below amortizes that DMA + pipeline overhead.
    for b in range(block_b):
        h = h_ref[b]                                          # (T, H) f32

        # ---- self-attention block (pre-LN) ----
        x = _layernorm(h, ln1_g[0], ln1_b[0], eps)
        qkv = jnp.dot(_bf16(x), wqkv[...],
                      preferred_element_type=jnp.float32) + bqkv[0]   # (T, 3H)
        q = qkv[:, 0:H]
        k = qkv[:, H:2 * H]
        v = qkv[:, 2 * H:3 * H]

        for hi in range(num_heads):
            sl = slice(hi * head_dim, (hi + 1) * head_dim)
            qh, kh, vh = _bf16(q[:, sl]), _bf16(k[:, sl]), _bf16(v[:, sl])
            # q @ k^T without materializing a transpose (NT dot_general).
            s = jax.lax.dot_general(
                qh, kh, (((1,), (1,)), ((), ())),
                preferred_element_type=jnp.float32) * scale           # (T, T)
            s = s - jnp.max(s, axis=-1, keepdims=True)
            p = jnp.exp(s)
            p = p * pl.reciprocal(jnp.sum(p, axis=-1, keepdims=True),
                                  approx=True)
            # per-head context written into the (T, H) VMEM scratch
            ctx_ref[:, sl] = jnp.dot(_bf16(p), vh,
                                     preferred_element_type=jnp.float32)

        # single K=H output projection over the assembled context
        attn_out = jnp.dot(_bf16(ctx_ref[...]), wo[...],
                           preferred_element_type=jnp.float32) + bo[0]
        h1 = h + attn_out

        # ---- MLP block (pre-LN) ----
        x2 = _layernorm(h1, ln2_g[0], ln2_b[0], eps)
        m = jnp.dot(_bf16(x2), w1[...],
                    preferred_element_type=jnp.float32) + b1[0]
        m = jax.nn.gelu(m, approximate=False)        # exact GELU (torch nn.GELU)
        m = jnp.dot(_bf16(m), w2[...],
                    preferred_element_type=jnp.float32) + b2[0]

        o_ref[b] = h1 + m


def ln_attnpool_kernel(h_ref, lng, lnb, aw, ab, feat_ref, attn_ref, *, eps):
    """Final encoder LayerNorm -> last_hidden_state, then AttentionLayer:
       scores = Linear(H,1)(x); attn = softmax(scores, dim=seq);
       features = sum(attn * x, dim=seq)."""
    h = h_ref[0]                                     # (T, H)
    x = _layernorm(h, lng[0], lnb[0], eps)           # last_hidden_state (per batch)
    s = jnp.dot(x, aw[...], preferred_element_type=jnp.float32) + ab[0]  # (T, 1)
    s = s - jnp.max(s, axis=0, keepdims=True)
    e = jnp.exp(s)
    a = e * pl.reciprocal(jnp.sum(e, axis=0, keepdims=True), approx=True)
    feat_ref[...] = jnp.sum(a * x, axis=0, keepdims=True)   # (1, H)
    attn_ref[0] = a


# ----------------------------- wrappers ------------------------------------- #

def linear_pallas(x2d, w, b, *, tile_m=256):
    """Patch-embedding linear, tiled over M so large batches stay within VMEM
    and get double-buffered / megacore-split across the M grid axis."""
    M, K = x2d.shape
    N = w.shape[1]
    blk = M if M <= tile_m else tile_m          # small M: single full block
    return pl.pallas_call(
        matmul_bias_kernel,
        out_shape=jax.ShapeDtypeStruct((M, N), jnp.float32),
        grid=(pl.cdiv(M, blk),),
        in_specs=[pl.BlockSpec((blk, K), lambda i: (i, 0)),
                  pl.BlockSpec((K, N), lambda i: (0, 0)),
                  pl.BlockSpec((1, N), lambda i: (0, 0))],
        out_specs=pl.BlockSpec((blk, N), lambda i: (i, 0)),
        compiler_params=pltpu.CompilerParams(
            dimension_semantics=("parallel",),
            vmem_limit_bytes=_VMEM_LIMIT),
    )(x2d, w, b)


_LAYER_ORDER = ("ln1_g", "ln1_b", "wqkv", "bqkv", "wo", "bo",
                "ln2_g", "ln2_b", "w1", "b1", "w2", "b2")


def encoder_layer(h, lp, *, num_heads, block_b=1):
    B, T, H = h.shape
    assert B % block_b == 0, "block_b must divide the batch"
    weights = [lp[k] for k in _LAYER_ORDER]

    def wspec(shape):
        nd = len(shape)
        # Grid-invariant weights (constant index_map -> DMA'd once, revisited).
        # At ViT-Base scale also add pipeline_mode=pl.Buffered(1) here and/or
        # tile the MLP over FF to keep single-buffered weights within VMEM.
        return pl.BlockSpec(shape, lambda b, _nd=nd: (0,) * _nd)

    in_specs = ([pl.BlockSpec((block_b, T, H), lambda b: (b, 0, 0))] +
                [wspec(w.shape) for w in weights])
    return pl.pallas_call(
        functools.partial(encoder_layer_kernel, num_heads=num_heads, eps=EPS),
        out_shape=jax.ShapeDtypeStruct((B, T, H), jnp.float32),
        grid=(B // block_b,),
        in_specs=in_specs,
        out_specs=pl.BlockSpec((block_b, T, H), lambda b: (b, 0, 0)),
        scratch_shapes=[pltpu.VMEM((T, H), jnp.float32)],   # per-image context
        compiler_params=pltpu.CompilerParams(
            dimension_semantics=("parallel",),               # batch axis -> v7x megacore
            vmem_limit_bytes=_VMEM_LIMIT),
    )(h, *weights)


def ln_attn_pool(h, lng, lnb, aw, ab):
    B, T, H = h.shape
    return pl.pallas_call(
        functools.partial(ln_attnpool_kernel, eps=EPS),
        out_shape=(jax.ShapeDtypeStruct((B, H), jnp.float32),
                   jax.ShapeDtypeStruct((B, T, 1), jnp.float32)),
        grid=(B,),
        in_specs=[pl.BlockSpec((1, T, H), lambda b: (b, 0, 0)),
                  pl.BlockSpec((1, H), lambda b: (0, 0)),
                  pl.BlockSpec((1, H), lambda b: (0, 0)),
                  pl.BlockSpec((H, 1), lambda b: (0, 0)),
                  pl.BlockSpec((1, 1), lambda b: (0, 0))],
        out_specs=(pl.BlockSpec((1, H), lambda b: (b, 0)),
                   pl.BlockSpec((1, T, 1), lambda b: (b, 0, 0))),
        compiler_params=pltpu.CompilerParams(
            dimension_semantics=("parallel",)),
    )(h, lng, lnb, aw, ab)


# ----------------------------- model glue ----------------------------------- #

def extract_patches(x, P):
    # x: (B, C, Himg, Wimg) NCHW.  Equivalent to Conv2d(kernel=P, stride=P)
    # patch unfolding; flattening order (c, p, q) matches the conv weight.
    B, C, Hi, Wi = x.shape
    nph, npw = Hi // P, Wi // P
    x = x.reshape(B, C, nph, P, npw, P)
    x = x.transpose(0, 2, 4, 1, 3, 5)            # (B, nph, npw, C, P, P)
    return x.reshape(B, nph * npw, C * P * P)


def init_params(key, *, C, P, H, NH, L, FF, T):
    ks = jax.random.split(key, 8 + L)
    bf16 = jnp.bfloat16

    def nrm(k, shape, dtype=jnp.float32):
        return (0.02 * jax.random.normal(k, shape, dtype=jnp.float32)).astype(dtype)

    params = {
        "patch_w": nrm(ks[0], (C * P * P, H), bf16),
        "patch_b": jnp.zeros((1, H), jnp.float32),
        "cls": nrm(ks[1], (1, 1, H)),
        "pos": nrm(ks[2], (1, T, H)),
        "ln_f_g": jnp.ones((1, H), jnp.float32),
        "ln_f_b": jnp.zeros((1, H), jnp.float32),
        "attn_w": nrm(ks[3], (H, 1)),
        "attn_b": jnp.zeros((1, 1), jnp.float32),
        "layers": [],
    }
    for li in range(L):
        lk = jax.random.split(ks[8 + li], 6)
        wq, wk, wv = nrm(lk[0], (H, H)), nrm(lk[1], (H, H)), nrm(lk[2], (H, H))
        params["layers"].append({
            "ln1_g": jnp.ones((1, H), jnp.float32),
            "ln1_b": jnp.zeros((1, H), jnp.float32),
            "wqkv": jnp.concatenate([wq, wk, wv], axis=1).astype(bf16),
            "bqkv": jnp.zeros((1, 3 * H), jnp.float32),
            "wo": nrm(lk[3], (H, H), bf16), "bo": jnp.zeros((1, H), jnp.float32),
            "ln2_g": jnp.ones((1, H), jnp.float32),
            "ln2_b": jnp.zeros((1, H), jnp.float32),
            "w1": nrm(lk[4], (H, FF), bf16), "b1": jnp.zeros((1, FF), jnp.float32),
            "w2": nrm(lk[5], (FF, H), bf16), "b2": jnp.zeros((1, H), jnp.float32),
        })
    return params


def vit_with_attention_forward(x, params, *, P, NH, enc_block_b=1):
    B = x.shape[0]
    patches = extract_patches(x, P)                      # (B, np, C*P*P)
    n_patch = patches.shape[1]
    emb = linear_pallas(patches.reshape(B * n_patch, -1),
                        params["patch_w"], params["patch_b"])
    H = emb.shape[-1]
    emb = emb.reshape(B, n_patch, H)

    cls = jnp.broadcast_to(params["cls"], (B, 1, H))
    h = jnp.concatenate([cls, emb], axis=1) + params["pos"]   # (B, T, H)

    for lp in params["layers"]:
        h = encoder_layer(h, lp, num_heads=NH, block_b=enc_block_b)

    # final LayerNorm (-> last_hidden_state) + AttentionLayer pooling
    features, attention_weights = ln_attn_pool(
        h, params["ln_f_g"], params["ln_f_b"],
        params["attn_w"], params["attn_b"])
    return features, attention_weights


# ----------------------------- main ------------------------------------------ #

if __name__ == "__main__":
    # Small synthetic ViT config (the real module loads a pretrained ViT).
    B, C, IMG, P = 2, 3, 16, 8          # image 16x16, patch 8 -> 4 patches
    H, NH, L, FF = 32, 4, 2, 64         # hidden, heads, layers, mlp dim
    T = (IMG // P) ** 2 + 1             # tokens = patches + [CLS] = 5

    key = jax.random.PRNGKey(0)
    k_x, k_p = jax.random.split(key)
    x = jax.random.normal(k_x, (B, C, IMG, IMG), dtype=jnp.float32)
    params = init_params(k_p, C=C, P=P, H=H, NH=NH, L=L, FF=FF, T=T)

    # block_b heuristic: with tiny B keep one image per grid step (lets the
    # batch grid split across v7x's two TensorCores); with larger batches pack
    # two images per step to amortize per-step weight DMA / pipeline overhead.
    enc_block_b = 2 if (B >= 4 and B % 2 == 0) else 1

    features, attention_weights = vit_with_attention_forward(
        x, params, P=P, NH=NH, enc_block_b=enc_block_b)
    jax.block_until_ready((features, attention_weights))

    assert features.shape == (B, H)
    assert attention_weights.shape == (B, T, 1)
    print("KERNEL_OK")
</pallas_src>

<mosaic_0001>
module attributes {stable_mosaic.version = 11 : i64} {
  func.func @matmul_bias_kernel(%arg0: i32, %arg1: memref<8x192xf32, #tpu.memory_space<vmem>>, %arg2: memref<192x32xbf16, #tpu.memory_space<vmem>>, %arg3: memref<1x32xf32, #tpu.memory_space<vmem>>, %arg4: memref<8x32xf32, #tpu.memory_space<vmem>>) attributes {dimension_semantics = [#tpu.dimension_semantics<parallel>], iteration_bounds = array<i64: 1>, scalar_prefetch = 0 : i64, scratch_operands = 0 : i64, tpu.core_type = #tpu.core_type<tc>, window_params = [{transform_indices = @transform_0, window_bounds = array<i64: 8, 192>}, {pipeline_mode = #tpu.pipeline_mode<synchronous>, transform_indices = @transform_1, window_bounds = array<i64: 192, 32>}, {pipeline_mode = #tpu.pipeline_mode<synchronous>, transform_indices = @transform_2, window_bounds = array<i64: 1, 32>}, {transform_indices = @transform_3, window_bounds = array<i64: 8, 32>}]} {
    %c0 = arith.constant 0 : index
    %c0_0 = arith.constant 0 : index
    %0 = vector.load %arg1[%c0, %c0_0] : memref<8x192xf32, #tpu.memory_space<vmem>>, vector<8x192xf32>
    %1 = arith.truncf %0 : vector<8x192xf32> to vector<8x192xbf16>
    %c0_1 = arith.constant 0 : index
    %c0_2 = arith.constant 0 : index
    %2 = vector.load %arg2[%c0_1, %c0_2] : memref<192x32xbf16, #tpu.memory_space<vmem>>, vector<192x32xbf16>
    %cst = arith.constant dense<0.000000e+00> : vector<8x32xf32>
    %3 = tpu.matmul %1, %2, %cst {dimension_numbers = #tpu.dot_dimension_numbers<[1], [0], [0], [1], [0, 0, 1, 1], [], []>} : vector<8x192xbf16>, vector<192x32xbf16>, vector<8x32xf32> -> vector<8x32xf32>
    %c0_3 = arith.constant 0 : index
    %c0_4 = arith.constant 0 : index
    %4 = vector.load %arg3[%c0_3, %c0_4] : memref<1x32xf32, #tpu.memory_space<vmem>>, vector<1x32xf32>
    %5 = vector.shape_cast %4 : vector<1x32xf32> to vector<32xf32>
    %6 = vector.shape_cast %5 : vector<32xf32> to vector<1x32xf32>
    %7 = vector.broadcast %6 : vector<1x32xf32> to vector<8x32xf32>
    %8 = arith.addf %3, %7 : vector<8x32xf32>
    %c0_5 = arith.constant 0 : index
    %c0_6 = arith.constant 0 : index
    %9 = vector.load %arg4[%c0_5, %c0_6] : memref<8x32xf32, #tpu.memory_space<vmem>>, vector<8x32xf32>
    tpu.vector_store %arg4[%c0_5, %c0_6], %8 {strides = array<i32>} : memref<8x32xf32, #tpu.memory_space<vmem>>, vector<8x32xf32>,
    return
  }
  func.func @transform_0(%arg0: i32) -> (i32, i32) {
    %c0_i32 = arith.constant 0 : i32
    %c0_i32_0 = arith.constant 0 : i32
    return %arg0, %c0_i32 : i32, i32
  }
  func.func @transform_1(%arg0: i32) -> (i32, i32) {
    %c0_i32 = arith.constant 0 : i32
    %c0_i32_0 = arith.constant 0 : i32
    %c0_i32_1 = arith.constant 0 : i32
    return %c0_i32, %c0_i32_0 : i32, i32
  }
  func.func @transform_2(%arg0: i32) -> (i32, i32) {
    %c0_i32 = arith.constant 0 : i32
    %c0_i32_0 = arith.constant 0 : i32
    %c0_i32_1 = arith.constant 0 : i32
    return %c0_i32, %c0_i32_0 : i32, i32
  }
  func.func @transform_3(%arg0: i32) -> (i32, i32) {
    %c0_i32 = arith.constant 0 : i32
    %c0_i32_0 = arith.constant 0 : i32
    return %arg0, %c0_i32 : i32, i32
  }
}

</mosaic_0001>

<llo_original>
// kernel: tpu_custom_call.1
$region0: #{tpu_custom_call.1}
  #allocation0 [shape = 'u32[]', space=smem, size = 0x4, offset = 0x4, fixed_abs, tag = 'smem constant byte address 0x4 - core index']
  #allocation1 [shape = 'u32[144,128]{1,0:T(1,128)}', space=vmem, size = 0x12000, scoped, tag = 'internal scratch']
  %s0 = inlined_call_operand.vmem [shape: f32[8,192], index: 0, kind: input, shape index: {}]
  %s1 = inlined_call_operand.vmem [shape: bf16[192,32], index: 1, kind: input, shape index: {}]
  %s2 = inlined_call_operand.vmem [shape: f32[1,32], index: 2, kind: input, shape index: {}]
  %s3 = inlined_call_operand.hbm [shape: f32[8,32], index: 3, kind: output, shape index: {}]
  %s4 = sld [smem:[#allocation0]]
  $region22: #{tpu_custom_call.1} parent=0
    _
  %s6 = ssub.s32 1, %s4
  %s7 = scalar_select 0, %s6, %s4
  $region1: #{tpu_custom_call.1} parent=0
    #allocation2 [shape = 'u8[4096]{0}', space=vmem, size = 0x1000, scoped, tag = 'output window, operand 0, single buffered']
    #allocation3 [shape = 's32[1]{0}', space=sflag, size = 0x4, scoped, tag = 'scoped memory for tpu_custom_call.1']
    %8 = vsyncpa [#allocation3], 0
    // Predicated region
    $region2: #{tpu_custom_call.1} parent=1 // pred_check
      _
    $region3: #{tpu_custom_call.1} parent=1 // pred_check_branch
      %10 = sbr.rel (0) target = $region5
    $region4: #{tpu_custom_call.1} parent=1 // pred_region
      _
    $region5: #{tpu_custom_call.1} parent=1 // pred_fallthru
      _
    // Predicated region
    $region6: #{tpu_custom_call.1} parent=1 // pred_check
      _
    $region7: #{tpu_custom_call.1} parent=1 // pred_check_branch
      %12 = sbr.rel (0) target = $region9
    $region8: #{tpu_custom_call.1} parent=1 // pred_region
      _
    $region9: #{tpu_custom_call.1} parent=1 // pred_fallthru
      _
    // Predicated region
    $region10: #{tpu_custom_call.1} parent=1 // pred_check
      _
    $region11: #{tpu_custom_call.1} parent=1 // pred_check_branch
      %14 = sbr.rel (0) target = $region13
    $region12: #{tpu_custom_call.1} parent=1 // pred_region
      _
    $region13: #{tpu_custom_call.1} parent=1 // pred_fallthru
      _
    %v16 = vld [vmem:[%s0] sm:$0xff]
    %v17 = vld [vmem:[%s0 + $0x8] sm:$0xff]
    %v18 = vpack.c.bf16 %v16, %v16
    %v19 = vpack.c.bf16 %v17, %v17
    %v20 = vld [vmem:[%s1] sm:$0xf]
    %v21 = vld [vmem:[%s1 + $0x4] sm:$0xf]
    %v22 = vld [vmem:[%s1 + $0x8] sm:$0xf]
    %v23 = vld [vmem:[%s1 + $0xc] sm:$0xf]
    %v24 = vld [vmem:[%s1 + $0x10] sm:$0xf]
    %v25 = vld [vmem:[%s1 + $0x14] sm:$0xf]
    %v26 = vld [vmem:[%s1 + $0x18] sm:$0xf]
    %v27 = vld [vmem:[%s1 + $0x1c] sm:$0xf]
    %v28 = vld [vmem:[%s1 + $0x20] sm:$0xf]
    %v29 = vld [vmem:[%s1 + $0x24] sm:$0xf]
    %v30 = vld [vmem:[%s1 + $0x28] sm:$0xf]
    %v31 = vld [vmem:[%s1 + $0x2c] sm:$0xf]
    %v32 = vld [vmem:[%s1 + $0x30] sm:$0xf]
    %v33 = vld [vmem:[%s1 + $0x34] sm:$0xf]
    %v34 = vld [vmem:[%s1 + $0x38] sm:$0xf]
    %v35 = vld [vmem:[%s1 + $0x3c] sm:$0xf]
    %v36 = vld [vmem:[%s1 + $0x40] sm:$0xf]
    %v37 = vld [vmem:[%s1 + $0x44] sm:$0xf]
    %v38 = vld [vmem:[%s1 + $0x48] sm:$0xf]
    %v39 = vld [vmem:[%s1 + $0x4c] sm:$0xf]
    %v40 = vld [vmem:[%s1 + $0x50] sm:$0xf]
    %v41 = vld [vmem:[%s1 + $0x54] sm:$0xf]
    %v42 = vld [vmem:[%s1 + $0x58] sm:$0xf]
    %v43 = vld [vmem:[%s1 + $0x5c] sm:$0xf]
    %v44 = vld [vmem:[%s2] sm:$0x1]
    %v46 = vlaneseq
    %v47 = vshrl.u32 %v46, 7
    %v48 = vsub.s32 0, %v47
    %v49 = vrot.slane %v44, %v48
    %v75 = vunpack.c.l.b16 %v20
    %v76 = vunpack.c.l.b16 %v21
    %v77 = vunpack.c.l.b16 %v22
    %v78 = vunpack.c.l.b16 %v23
    %v79 = vunpack.c.l.b16 %v24
    %v80 = vunpack.c.l.b16 %v25
    %v81 = vunpack.c.l.b16 %v26
    %v82 = vunpack.c.l.b16 %v27
    %v83 = vunpack.c.l.b16 %v28
    %v84 = vunpack.c.l.b16 %v29
    %v85 = vunpack.c.l.b16 %v30
    %v86 = vunpack.c.l.b16 %v31
    %v87 = vunpack.c.l.b16 %v32
    %v88 = vunpack.c.l.b16 %v33
    %v89 = vunpack.c.l.b16 %v34
    %v90 = vunpack.c.l.b16 %v35
    %v91 = vunpack.c.l.b16 %v36
    %v92 = vunpack.c.l.b16 %v37
    %v93 = vunpack.c.l.b16 %v38
    %v94 = vunpack.c.l.b16 %v39
    %v95 = vunpack.c.l.b16 %v40
    %v96 = vunpack.c.l.b16 %v41
    %v97 = vunpack.c.l.b16 %v42
    %v98 = vunpack.c.l.b16 %v43
    %v99 = vpack.c.b16 %v76, %v75
    %v100 = vpack.c.b16 %v78, %v77
    %v101 = vpack.c.b16 %v80, %v79
    %v102 = vpack.c.b16 %v82, %v81
    %v103 = vpack.c.b16 %v84, %v83
    %v104 = vpack.c.b16 %v86, %v85
    %v105 = vpack.c.b16 %v88, %v87
    %v106 = vpack.c.b16 %v90, %v89
    %v107 = vpack.c.b16 %v92, %v91
    %v108 = vpack.c.b16 %v94, %v93
    %v109 = vpack.c.b16 %v96, %v95
    %v110 = vpack.c.b16 %v98, %v97
    %vm123 = vcmask 523264
    %v125 = vsel %vm123, %v19, 0
    %127 = vmatprep.subr.bf16.mxu0 0
    %128 = vmatpush1.bf16.msra.mxu0 %v99
    %129 = vmatprep.subr.bf16.mxu0 0
    %130 = vmatpush1.bf16.msra.mxu0 %v100
    %131 = vmatprep.subr.bf16.mxu0 0
    %132 = vmatpush1.bf16.msra.mxu0 %v101
    %133 = vmatprep.subr.bf16.mxu0 0
    %134 = vmatpush1.bf16.msra.mxu0 %v102
    %135 = vmatprep.subr.bf16.mxu0 0
    %136 = vmatpush1.bf16.msra.mxu0 %v103
    %137 = vmatprep.subr.bf16.mxu0 0
    %138 = vmatpush1.bf16.msra.mxu0 %v104
    %139 = vmatprep.subr.bf16.mxu0 0
    %140 = vmatpush1.bf16.msra.mxu0 %v105
    %141 = vmatprep.subr.bf16.mxu0 0
    %142 = vmatpush1.bf16.msra.mxu0 %v106
    %143 = vmatprep.subr.bf16.mxu0 0
    %144 = vmatpush1.bf16.msra.mxu0 %v107
    %145 = vmatprep.subr.bf16.mxu0 0
    %146 = vmatpush1.bf16.msra.mxu0 %v108
    %147 = vmatprep.subr.bf16.mxu0 0
    %148 = vmatpush1.bf16.msra.mxu0 %v109
    %149 = vmatprep.subr.bf16.mxu0 0
    %150 = vmatpush1.bf16.msra.mxu0 %v110
    %151 = vmatprep.subr.bf16.mxu0 0
    %152 = vmatpush1.bf16.msra.mxu0 0
    %153 = vmatprep.subr.bf16.mxu0 0
    %154 = vmatpush1.bf16.msra.mxu0 0
    %155 = vmatprep.subr.bf16.mxu0 0
    %156 = vmatpush1.bf16.msra.mxu0 0
    %157 = vmatprep.subr.bf16.mxu0 0
    %158 = vmatpush1.bf16.msra.mxu0 0
    %159 = vmatprep.mubr.bf16.mxu0 %v125
    %160 = vmatmul.mubr.bf16.gmra.mrb[0].mxu0 %v18
    %v161 = vpop.f32.mrb[0].mxu0
    %v162 = vadd.f32 %v49, %v161
    %v163 = vpop.f32.mrb[0].mxu0
    %v164 = vpop.f32.mrb[0].mxu0
    %v165 = vpop.f32.mrb[0].mxu0
    %166 = vdwg.mxu0
    %vm167 = vcmask 261120
    %168 = vst.msk [vmem:[#allocation2] sm:$0xff] %vm167, %v162
    // Predicated region
    $region14: #{tpu_custom_call.1} parent=1 // pred_check
      _
    $region15: #{tpu_custom_call.1} parent=1 // pred_check_branch
      %170 = sbr.rel (0) target = $region17
    $region16: #{tpu_custom_call.1} parent=1 // pred_region
      %s172 = ssub.s32 128, 128
      %173 = vsyncadd [#allocation3], %s172
      %s175 = sshll.u32 [#allocation2], 4
      %s176 = int_to_ptr.vmem [resolvable:$true] %s175
      %178 = dma.vmem_to_hbm [thread:$0]  %s176, 128, %s3, [#allocation3]
    $region17: #{tpu_custom_call.1} parent=1 // pred_fallthru
      _
    // Predicated region
    $region18: #{tpu_custom_call.1} parent=1 // pred_check
      _
    $region19: #{tpu_custom_call.1} parent=1 // pred_check_branch
      %180 = sbr.rel (0) target = $region21
    $region20: #{tpu_custom_call.1} parent=1 // pred_region
      %181 = dma.done [#allocation3], 128
    $region21: #{tpu_custom_call.1} parent=1 // pred_fallthru
      _
    %182 = vsyncpa [#allocation3], 1

</llo_original>
